<compile_context>
chip_gen: v5e
topology: v5e:2x2
jax: 0.10.0
libtpu: 0.0.40
codegen_flags: <defaults>
</compile_context>

<pallas_src>
import functools

import numpy as np
import jax
import jax.numpy as jnp
from jax import lax
from jax.experimental import pallas as pl
from jax.experimental.pallas import tpu as pltpu


# ---------------------------------------------------------------------------
# Pallas kernel: one GCN layer  out = act( A_hat @ (X @ W) + b )
# grid = (row_tiles, k_tiles); k is the reduction axis (accumulator in VMEM).
# ---------------------------------------------------------------------------
def gcn_layer_kernel(a_ref, x_ref, w_ref, b_ref, o_ref, acc_ref,
                     *, activation, c_valid):
    k = pl.program_id(1)

    @pl.when(k == 0)
    def _():
        acc_ref[...] = jnp.zeros_like(acc_ref)

    # FLOP-minimal order: project the k-tile of X first (F, H << N), then
    # aggregate with the (tm, tk) tile of the normalized adjacency.
    xw = jnp.dot(x_ref[...], w_ref[...],
                 preferred_element_type=jnp.float32).astype(jnp.bfloat16)
    acc_ref[...] += jnp.dot(a_ref[...], xw,
                            preferred_element_type=jnp.float32)

    @pl.when(k == pl.num_programs(1) - 1)
    def _():
        z = acc_ref[...] + b_ref[...]                      # bias broadcast [1, Hp]
        if activation == "relu":
            o_ref[...] = jnp.maximum(z, 0.0).astype(o_ref.dtype)
        else:  # log_softmax over the valid class lanes only
            col = lax.broadcasted_iota(jnp.int32, z.shape, 1)
            z = jnp.where(col < c_valid, z, -jnp.inf)      # mask padded lanes
            m = jnp.max(z, axis=1, keepdims=True)
            s = z - m
            lse = jnp.log(jnp.sum(jnp.exp(s), axis=1, keepdims=True))
            o_ref[...] = (s - lse).astype(o_ref.dtype)


def gcn_layer(a_p, x_p, w_p, b_p, *, activation, c_valid, out_dtype, tm, tk):
    n_pad = a_p.shape[0]
    f_pad = x_p.shape[1]
    h_pad = w_p.shape[1]
    kernel = functools.partial(gcn_layer_kernel,
                               activation=activation, c_valid=c_valid)
    return pl.pallas_call(
        kernel,
        out_shape=jax.ShapeDtypeStruct((n_pad, h_pad), out_dtype),
        grid_spec=pltpu.PrefetchScalarGridSpec(
            num_scalar_prefetch=0,
            grid=(n_pad // tm, n_pad // tk),
            in_specs=[
                pl.BlockSpec((tm, tk), lambda i, k: (i, k)),        # A_hat tile
                pl.BlockSpec((tk, f_pad), lambda i, k: (k, 0)),     # X k-tile
                pl.BlockSpec((f_pad, h_pad), lambda i, k: (0, 0)),  # W (resident)
                pl.BlockSpec((1, h_pad), lambda i, k: (0, 0)),      # bias (full array)
            ],
            out_specs=pl.BlockSpec((tm, h_pad), lambda i, k: (i, 0)),
            scratch_shapes=[pltpu.VMEM((tm, h_pad), jnp.float32)],  # f32 accum
        ),
        compiler_params=pltpu.CompilerParams(
            dimension_semantics=("parallel", "arbitrary")),
    )(a_p, x_p, w_p, b_p)


# ---------------------------------------------------------------------------
# Full forward pass (padding / dtype glue + two pallas layer calls).
# ---------------------------------------------------------------------------
def _round_up(x, m):
    return ((x + m - 1) // m) * m


def _pad2(a, rows, cols):
    return jnp.pad(a, ((0, rows - a.shape[0]), (0, cols - a.shape[1])))


def gcn_forward(a_hat, x, w1, b1, w2, b2):
    n = x.shape[0]
    c = w2.shape[1]

    # Tile choice: 256 feeds the v6e/v7x 256x256 MXU fully; 128 is enough for
    # v5e's 128x128 MXUs and for tiny padded problems (grid = (1, 1) here).
    tm = 256 if n >= 256 else 128
    tk = tm

    n_pad = _round_up(n, tm)
    f_pad = _round_up(x.shape[1], 128)
    h_pad = _round_up(w1.shape[1], 128)
    c_pad = _round_up(c, 128)

    # bf16 operands for the MXU; biases stay f32 (added to the f32 accumulator).
    a_p = _pad2(a_hat, n_pad, n_pad).astype(jnp.bfloat16)
    x_p = _pad2(x, n_pad, f_pad).astype(jnp.bfloat16)
    w1_p = _pad2(w1, f_pad, h_pad).astype(jnp.bfloat16)
    b1_p = _pad2(b1, 1, h_pad).astype(jnp.float32)
    w2_p = _pad2(w2, h_pad, c_pad).astype(jnp.bfloat16)
    b2_p = _pad2(b2, 1, c_pad).astype(jnp.float32)

    # layer 1: GCNConv(F -> H) + ReLU   (bf16 output -> half the DMA into layer 2)
    h = gcn_layer(a_p, x_p, w1_p, b1_p, activation="relu", c_valid=0,
                  out_dtype=jnp.bfloat16, tm=tm, tk=tk)

    # dropout(p=0.5): module is evaluated in eval mode -> identity.
    # TODO(synk): training-mode dropout (pltpu.prng_random_bits mask) not needed for inference.

    # layer 2: GCNConv(H -> 2) + log_softmax (padded class lanes masked in-kernel)
    z = gcn_layer(a_p, h, w2_p, b2_p, activation="log_softmax", c_valid=c,
                  out_dtype=jnp.float32, tm=tm, tk=tk)

    return z[:n, :c]


# ---------------------------------------------------------------------------
# Glue: kNN edge construction (== create_edges) and GCN normalization.
# ---------------------------------------------------------------------------
def create_edges_np(X, k=5):
    # euclidean_distances + argsort, take the k nearest (excluding self),
    # add both directions (matches the reference create_edges).
    d2 = ((X[:, None, :] - X[None, :, :]) ** 2).sum(-1)
    knn = np.argsort(d2, axis=1)[:, 1:k + 1]
    edges = []
    for i, neigh in enumerate(knn):
        for j in neigh:
            edges.append([i, int(j)])
            edges.append([int(j), i])
    return np.asarray(edges, dtype=np.int32).T  # [2, E]


def build_normalized_adjacency(edge_index, num_nodes):
    # PyG GCNConv: add self-loops, edge_weight=1 per edge (duplicates accumulate),
    # A_hat[dst, src] = deg^{-1/2}[dst] * A[dst, src] * deg^{-1/2}[src]
    src, dst = edge_index[0], edge_index[1]
    A = jnp.zeros((num_nodes, num_nodes), jnp.float32)
    A = A.at[dst, src].add(1.0)
    A = A + jnp.eye(num_nodes, dtype=jnp.float32)          # self-loops
    deg = jnp.sum(A, axis=1)
    dinv = jnp.where(deg > 0, 1.0 / jnp.sqrt(deg), 0.0)
    return (dinv[:, None] * A) * dinv[None, :]


def gcn_reference(a_hat, x, w1, b1, w2, b2):
    h = jnp.maximum(a_hat @ (x @ w1) + b1, 0.0)
    z = a_hat @ (h @ w2) + b2
    return jax.nn.log_softmax(z, axis=1)


if __name__ == "__main__":
    key = jax.random.PRNGKey(0)
    N, F_IN, HIDDEN, C_OUT, K = 8, 7, 16, 2, 5

    k_x, k_w1, k_w2 = jax.random.split(key, 3)

    # node features: [N, 7] = (anaemia, sex, age, CPK, ejection_fraction,
    #                          serum_creatinine, serum_sodium)
    x = jax.random.normal(k_x, (N, F_IN), dtype=jnp.float32)

    # kNN graph edges (create_edges semantics)
    edge_index = jnp.asarray(create_edges_np(np.asarray(x), k=K))

    # deterministic glorot-style weights, zero biases (GCNConv default bias init)
    w1 = jax.random.normal(k_w1, (F_IN, HIDDEN), dtype=jnp.float32) * (1.0 / np.sqrt(F_IN))
    b1 = jnp.zeros((1, HIDDEN), dtype=jnp.float32)
    w2 = jax.random.normal(k_w2, (HIDDEN, C_OUT), dtype=jnp.float32) * (1.0 / np.sqrt(HIDDEN))
    b2 = jnp.zeros((1, C_OUT), dtype=jnp.float32)

    a_hat = build_normalized_adjacency(edge_index, N)

    out = gcn_forward(a_hat, x, w1, b1, w2, b2)
    jax.block_until_ready(out)

    assert out.shape == (N, C_OUT)
    # log_softmax rows must sum (in prob space) to 1
    assert np.allclose(np.exp(np.asarray(out)).sum(axis=1), 1.0, atol=1e-3)
    # matches the plain-f32 reference up to bf16 operand precision
    ref = np.asarray(gcn_reference(a_hat, x, w1, b1, w2, b2))
    assert np.allclose(np.asarray(out), ref, atol=0.1), np.abs(np.asarray(out) - ref).max()
    print("KERNEL_OK")
</pallas_src>

<mosaic_0001>
module attributes {stable_mosaic.version = 11 : i64} {
  func.func @gcn_layer_kernel(%arg0: i32, %arg1: i32, %arg2: memref<128x128xbf16, #tpu.memory_space<vmem>>, %arg3: memref<128x128xbf16, #tpu.memory_space<vmem>>, %arg4: memref<128x128xbf16, #tpu.memory_space<vmem>>, %arg5: memref<1x128xf32, #tpu.memory_space<vmem>>, %arg6: memref<128x128xbf16, #tpu.memory_space<vmem>>, %arg7: memref<128x128xf32, #tpu.memory_space<vmem>>) attributes {dimension_semantics = [#tpu.dimension_semantics<parallel>, #tpu.dimension_semantics<arbitrary>], iteration_bounds = array<i64: 1, 1>, scalar_prefetch = 0 : i64, scratch_operands = 1 : i64, tpu.core_type = #tpu.core_type<tc>, window_params = [{transform_indices = @transform_0, window_bounds = array<i64: 128, 128>}, {transform_indices = @transform_1, window_bounds = array<i64: 128, 128>}, {pipeline_mode = #tpu.pipeline_mode<synchronous>, transform_indices = @transform_2, window_bounds = array<i64: 128, 128>}, {pipeline_mode = #tpu.pipeline_mode<synchronous>, transform_indices = @transform_3, window_bounds = array<i64: 1, 128>}, {transform_indices = @transform_4, window_bounds = array<i64: 128, 128>}]} {
    %c0_i32 = arith.constant 0 : i32
    %0 = arith.cmpi eq, %arg1, %c0_i32 : i32
    %1 = arith.extui %0 : i1 to i32
    %c0_i32_0 = arith.constant 0 : i32
    %2 = arith.cmpi ne, %1, %c0_i32_0 : i32
    scf.if %2 {
      %cst_13 = arith.constant 0.000000e+00 : f32
      %15 = vector.broadcast %cst_13 : f32 to vector<128x128xf32>
      %c0_14 = arith.constant 0 : index
      %c0_15 = arith.constant 0 : index
      %16 = vector.load %arg7[%c0_14, %c0_15] : memref<128x128xf32, #tpu.memory_space<vmem>>, vector<128x128xf32>
      tpu.vector_store %arg7[%c0_14, %c0_15], %15 {strides = array<i32>} : memref<128x128xf32, #tpu.memory_space<vmem>>, vector<128x128xf32>,
    } else {
    }
    %c0 = arith.constant 0 : index
    %c0_1 = arith.constant 0 : index
    %3 = vector.load %arg3[%c0, %c0_1] : memref<128x128xbf16, #tpu.memory_space<vmem>>, vector<128x128xbf16>
    %c0_2 = arith.constant 0 : index
    %c0_3 = arith.constant 0 : index
    %4 = vector.load %arg4[%c0_2, %c0_3] : memref<128x128xbf16, #tpu.memory_space<vmem>>, vector<128x128xbf16>
    %cst = arith.constant dense<0.000000e+00> : vector<128x128xf32>
    %5 = tpu.matmul %3, %4, %cst {dimension_numbers = #tpu.dot_dimension_numbers<[1], [0], [0], [1], [0, 0, 1, 1], [], []>} : vector<128x128xbf16>, vector<128x128xbf16>, vector<128x128xf32> -> vector<128x128xf32>
    %6 = arith.truncf %5 : vector<128x128xf32> to vector<128x128xbf16>
    %c0_4 = arith.constant 0 : index
    %c0_5 = arith.constant 0 : index
    %7 = vector.load %arg7[%c0_4, %c0_5] : memref<128x128xf32, #tpu.memory_space<vmem>>, vector<128x128xf32>
    %c0_6 = arith.constant 0 : index
    %c0_7 = arith.constant 0 : index
    %8 = vector.load %arg2[%c0_6, %c0_7] : memref<128x128xbf16, #tpu.memory_space<vmem>>, vector<128x128xbf16>
    %cst_8 = arith.constant dense<0.000000e+00> : vector<128x128xf32>
    %9 = tpu.matmul %8, %6, %cst_8 {dimension_numbers = #tpu.dot_dimension_numbers<[1], [0], [0], [1], [0, 0, 1, 1], [], []>} : vector<128x128xbf16>, vector<128x128xbf16>, vector<128x128xf32> -> vector<128x128xf32>
    %10 = arith.addf %7, %9 : vector<128x128xf32>
    %c0_9 = arith.constant 0 : index
    %c0_10 = arith.constant 0 : index
    %11 = vector.load %arg7[%c0_9, %c0_10] : memref<128x128xf32, #tpu.memory_space<vmem>>, vector<128x128xf32>
    tpu.vector_store %arg7[%c0_9, %c0_10], %10 {strides = array<i32>} : memref<128x128xf32, #tpu.memory_space<vmem>>, vector<128x128xf32>,
    %c0_i32_11 = arith.constant 0 : i32
    %12 = arith.cmpi eq, %arg1, %c0_i32_11 : i32
    %13 = arith.extui %12 : i1 to i32
    %c0_i32_12 = arith.constant 0 : i32
    %14 = arith.cmpi ne, %13, %c0_i32_12 : i32
    scf.if %14 {
      %c0_13 = arith.constant 0 : index
      %c0_14 = arith.constant 0 : index
      %15 = vector.load %arg7[%c0_13, %c0_14] : memref<128x128xf32, #tpu.memory_space<vmem>>, vector<128x128xf32>
      %c0_15 = arith.constant 0 : index
      %c0_16 = arith.constant 0 : index
      %16 = vector.load %arg5[%c0_15, %c0_16] : memref<1x128xf32, #tpu.memory_space<vmem>>, vector<1x128xf32>
      %17 = vector.broadcast %16 : vector<1x128xf32> to vector<128x128xf32>
      %18 = arith.addf %15, %17 : vector<128x128xf32>
      %cst_17 = arith.constant 0.000000e+00 : f32
      %19 = vector.broadcast %cst_17 : f32 to vector<128x128xf32>
      %20 = arith.maximumf %18, %19 : vector<128x128xf32>
      %21 = arith.truncf %20 : vector<128x128xf32> to vector<128x128xbf16>
      %c0_18 = arith.constant 0 : index
      %c0_19 = arith.constant 0 : index
      %22 = vector.load %arg6[%c0_18, %c0_19] : memref<128x128xbf16, #tpu.memory_space<vmem>>, vector<128x128xbf16>
      tpu.vector_store %arg6[%c0_18, %c0_19], %21 {strides = array<i32>} : memref<128x128xbf16, #tpu.memory_space<vmem>>, vector<128x128xbf16>,
    } else {
    }
    return
  }
  func.func @transform_0(%arg0: i32, %arg1: i32) -> (i32, i32) {
    %c0_i32 = arith.constant 0 : i32
    return %arg0, %arg1 : i32, i32
  }
  func.func @transform_1(%arg0: i32, %arg1: i32) -> (i32, i32) {
    %c0_i32 = arith.constant 0 : i32
    %c0_i32_0 = arith.constant 0 : i32
    return %arg1, %c0_i32 : i32, i32
  }
  func.func @transform_2(%arg0: i32, %arg1: i32) -> (i32, i32) {
    %c0_i32 = arith.constant 0 : i32
    %c0_i32_0 = arith.constant 0 : i32
    %c0_i32_1 = arith.constant 0 : i32
    return %c0_i32, %c0_i32_0 : i32, i32
  }
  func.func @transform_3(%arg0: i32, %arg1: i32) -> (i32, i32) {
    %c0_i32 = arith.constant 0 : i32
    %c0_i32_0 = arith.constant 0 : i32
    %c0_i32_1 = arith.constant 0 : i32
    return %c0_i32, %c0_i32_0 : i32, i32
  }
  func.func @transform_4(%arg0: i32, %arg1: i32) -> (i32, i32) {
    %c0_i32 = arith.constant 0 : i32
    %c0_i32_0 = arith.constant 0 : i32
    return %arg0, %c0_i32 : i32, i32
  }
}

</mosaic_0001>

<llo_original>
// kernel: tpu_custom_call.1
$region0: #{tpu_custom_call.1}
  #allocation0 [shape = 'u32[]', space=smem, size = 0x4, offset = 0x4, fixed_abs, tag = 'smem constant byte address 0x4 - core index']
  #allocation1 [shape = 'u32[72,128]{1,0:T(1,128)}', space=vmem, size = 0x9000, scoped, tag = 'internal scratch']
  #allocation2 [shape = 'f32[128,128]{1,0:T(8,128)}', space=vmem, size = 0x10000, scoped, tag = 'scratch operand']
  %s0 = inlined_call_operand.hbm [shape: bf16[128,128], index: 0, kind: input, shape index: {}]
  %s1 = inlined_call_operand.hbm [shape: bf16[128,128], index: 1, kind: input, shape index: {}]
  %s2 = inlined_call_operand.hbm [shape: bf16[128,128], index: 2, kind: input, shape index: {}]
  %s3 = inlined_call_operand.vmem [shape: f32[1,128], index: 3, kind: input, shape index: {}]
  %s4 = inlined_call_operand.hbm [shape: bf16[128,128], index: 4, kind: output, shape index: {}]
  %s5 = sld [smem:[#allocation0]]
  $region46: #{tpu_custom_call.1} parent=0
    _
  %s7 = ssub.s32 1, %s5
  %s8 = scalar_select 0, %s7, %s5
  $region1: #{tpu_custom_call.1} parent=0
    #allocation3 [shape = 'u8[32768]{0}', space=vmem, size = 0x8000, scoped, tag = 'input window, operand 0, single buffered']
    #allocation4 [shape = 's32[1]{0}', space=sflag, size = 0x4, scoped, tag = 'scoped memory for tpu_custom_call.1']
    #allocation5 [shape = 's32[1]{0}', space=sflag, size = 0x4, scoped, tag = 'scoped memory for tpu_custom_call.1']
    #allocation6 [shape = 'u8[32768]{0}', space=vmem, size = 0x8000, scoped, tag = 'input window, operand 1, single buffered']
    #allocation7 [shape = 's32[1]{0}', space=sflag, size = 0x4, scoped, tag = 'scoped memory for tpu_custom_call.1']
    #allocation8 [shape = 'u8[32768]{0}', space=vmem, size = 0x8000, scoped, tag = 'input window, operand 2, single buffered']
    #allocation9 [shape = 'u8[32768]{0}', space=vmem, size = 0x8000, scoped, tag = 'output window, operand 0, single buffered']
    %9 = vsyncpa [#allocation4], 0
    %10 = vsyncpa [#allocation7], 0
    %11 = vsyncpa [#allocation5], 0
    // Predicated region
    $region2: #{tpu_custom_call.1} parent=1 // pred_check
      _
    $region3: #{tpu_custom_call.1} parent=1 // pred_check_branch
      %13 = sbr.rel (0) target = $region5
    $region4: #{tpu_custom_call.1} parent=1 // pred_region
      %15 = vsyncadd [#allocation4], 0
      %s16 = sshll.u32 %s0, 4
      %s17 = int_to_ptr.hbm [resolvable:$true] %s16
      %s18 = sshll.u32 [#allocation3], 4
      %s19 = int_to_ptr.vmem [resolvable:$true] %s18
      %24 = dma.hbm_to_vmem [thread:$0]  %s17, 1024, %s19, [#allocation4], 64, 64, 4
    $region5: #{tpu_custom_call.1} parent=1 // pred_fallthru
      _
    // Predicated region
    $region6: #{tpu_custom_call.1} parent=1 // pred_check
      _
    $region7: #{tpu_custom_call.1} parent=1 // pred_check_branch
      %26 = sbr.rel (0) target = $region9
    $region8: #{tpu_custom_call.1} parent=1 // pred_region
      %28 = vsyncadd [#allocation7], 0
      %s29 = sshll.u32 %s1, 4
      %s30 = int_to_ptr.hbm [resolvable:$true] %s29
      %s31 = sshll.u32 [#allocation6], 4
      %s32 = int_to_ptr.vmem [resolvable:$true] %s31
      %37 = dma.hbm_to_vmem [thread:$0]  %s30, 1024, %s32, [#allocation7], 64, 64, 4
    $region9: #{tpu_custom_call.1} parent=1 // pred_fallthru
      _
    // Predicated region
    $region10: #{tpu_custom_call.1} parent=1 // pred_check
      _
    $region11: #{tpu_custom_call.1} parent=1 // pred_check_branch
      %39 = sbr.rel (0) target = $region13
    $region12: #{tpu_custom_call.1} parent=1 // pred_region
      %41 = vsyncadd [#allocation7], 0
      %s42 = sshll.u32 %s2, 4
      %s43 = int_to_ptr.hbm [resolvable:$true] %s42
      %s44 = sshll.u32 [#allocation8], 4
      %s45 = int_to_ptr.vmem [resolvable:$true] %s44
      %50 = dma.hbm_to_vmem [thread:$0]  %s43, 1024, %s45, [#allocation7], 64, 64, 4
    $region13: #{tpu_custom_call.1} parent=1 // pred_fallthru
      _
    // Predicated region
    $region14: #{tpu_custom_call.1} parent=1 // pred_check
      _
    $region15: #{tpu_custom_call.1} parent=1 // pred_check_branch
      %52 = sbr.rel (0) target = $region17
    $region16: #{tpu_custom_call.1} parent=1 // pred_region
      _
    $region17: #{tpu_custom_call.1} parent=1 // pred_fallthru
      _
    // Predicated region
    $region18: #{tpu_custom_call.1} parent=1 // pred_check
      _
    $region19: #{tpu_custom_call.1} parent=1 // pred_check_branch
      %54 = sbr.rel (0) target = $region21
    $region20: #{tpu_custom_call.1} parent=1 // pred_region
      %56 = dma.done [#allocation4], 1024
    $region21: #{tpu_custom_call.1} parent=1 // pred_fallthru
      _
    // Predicated region
    $region22: #{tpu_custom_call.1} parent=1 // pred_check
      _
    $region23: #{tpu_custom_call.1} parent=1 // pred_check_branch
      %58 = sbr.rel (0) target = $region25
    $region24: #{tpu_custom_call.1} parent=1 // pred_region
      %60 = dma.done [#allocation7], 1024
    $region25: #{tpu_custom_call.1} parent=1 // pred_fallthru
      _
    // Predicated region
    $region26: #{tpu_custom_call.1} parent=1 // pred_check
      _
    $region27: #{tpu_custom_call.1} parent=1 // pred_check_branch
      %62 = sbr.rel (0) target = $region29
    $region28: #{tpu_custom_call.1} parent=1 // pred_region
      %64 = dma.done [#allocation7], 1024
    $region29: #{tpu_custom_call.1} parent=1 // pred_fallthru
      _
    %p65 = scmp.eq.s32.totalorder 0, 0
    // Predicated region
    $region30: #{tpu_custom_call.1} parent=1 // pred_check
      %p66 = pneg %p65
    $region31: #{tpu_custom_call.1} parent=1 // pred_check_branch
      %68 = sbr.rel (%p66) target = $region33
    $region32: #{tpu_custom_call.1} parent=1 // pred_region
      %69 = vst [vmem:[#allocation2] sm:$0xff] 0.0
      %70 = vst [vmem:[#allocation2 + $0x8] sm:$0xff] 0.0
      %71 = vst [vmem:[#allocation2 + $0x10] sm:$0xff] 0.0
      %72 = vst [vmem:[#allocation2 + $0x18] sm:$0xff] 0.0
      %73 = vst [vmem:[#allocation2 + $0x20] sm:$0xff] 0.0
      %74 = vst [vmem:[#allocation2 + $0x28] sm:$0xff] 0.0
      %75 = vst [vmem:[#allocation2 + $0x30] sm:$0xff] 0.0
      %76 = vst [vmem:[#allocation2 + $0x38] sm:$0xff] 0.0
      %77 = vst [vmem:[#allocation2 + $0x40] sm:$0xff] 0.0
      %78 = vst [vmem:[#allocation2 + $0x48] sm:$0xff] 0.0
      %79 = vst [vmem:[#allocation2 + $0x50] sm:$0xff] 0.0
      %80 = vst [vmem:[#allocation2 + $0x58] sm:$0xff] 0.0
      %81 = vst [vmem:[#allocation2 + $0x60] sm:$0xff] 0.0
      %82 = vst [vmem:[#allocation2 + $0x68] sm:$0xff] 0.0
      %83 = vst [vmem:[#allocation2 + $0x70] sm:$0xff] 0.0
      %84 = vst [vmem:[#allocation2 + $0x78] sm:$0xff] 0.0
    $region33: #{tpu_custom_call.1} parent=1 // pred_fallthru
      _
    %v85 = vld [vmem:[#allocation6] sm:$0xf]
    %v86 = vld [vmem:[#allocation6 + $0x4] sm:$0xf]
    %v87 = vld [vmem:[#allocation6 + $0x8] sm:$0xf]
    %v88 = vld [vmem:[#allocation6 + $0xc] sm:$0xf]
    %v89 = vld [vmem:[#allocation6 + $0x10] sm:$0xf]
    %v90 = vld [vmem:[#allocation6 + $0x14] sm:$0xf]
    %v91 = vld [vmem:[#allocation6 + $0x18] sm:$0xf]
    %v92 = vld [vmem:[#allocation6 + $0x1c] sm:$0xf]
    %v93 = vld [vmem:[#allocation6 + $0x20] sm:$0xf]
    %v94 = vld [vmem:[#allocation6 + $0x24] sm:$0xf]
    %v95 = vld [vmem:[#allocation6 + $0x28] sm:$0xf]
    %v96 = vld [vmem:[#allocation6 + $0x2c] sm:$0xf]
    %v97 = vld [vmem:[#allocation6 + $0x30] sm:$0xf]
    %v98 = vld [vmem:[#allocation6 + $0x34] sm:$0xf]
    %v99 = vld [vmem:[#allocation6 + $0x38] sm:$0xf]
    %v100 = vld [vmem:[#allocation6 + $0x3c] sm:$0xf]
    %v101 = vld [vmem:[#allocation8] sm:$0xf]
    %v102 = vld [vmem:[#allocation8 + $0x4] sm:$0xf]
    %v103 = vld [vmem:[#allocation8 + $0x8] sm:$0xf]
    %v104 = vld [vmem:[#allocation8 + $0xc] sm:$0xf]
    %v105 = vld [vmem:[#allocation8 + $0x10] sm:$0xf]
    %v106 = vld [vmem:[#allocation8 + $0x14] sm:$0xf]
    %v107 = vld [vmem:[#allocation8 + $0x18] sm:$0xf]
    %v108 = vld [vmem:[#allocation8 + $0x1c] sm:$0xf]
    %v109 = vld [vmem:[#allocation8 + $0x20] sm:$0xf]
    %v110 = vld [vmem:[#allocation8 + $0x24] sm:$0xf]
    %v111 = vld [vmem:[#allocation8 + $0x28] sm:$0xf]
    %v112 = vld [vmem:[#allocation8 + $0x2c] sm:$0xf]
    %v113 = vld [vmem:[#allocation8 + $0x30] sm:$0xf]
    %v114 = vld [vmem:[#allocation8 + $0x34] sm:$0xf]
    %v115 = vld [vmem:[#allocation8 + $0x38] sm:$0xf]
    %v116 = vld [vmem:[#allocation8 + $0x3c] sm:$0xf]
    %v133 = vunpack.c.l.b16 %v85
    %v134 = vunpack.c.l.b16 %v86
    %v135 = vunpack.c.l.b16 %v87
    %v136 = vunpack.c.l.b16 %v88
    %v137 = vunpack.c.l.b16 %v89
    %v138 = vunpack.c.l.b16 %v90
    %v139 = vunpack.c.l.b16 %v91
    %v140 = vunpack.c.l.b16 %v92
    %v141 = vunpack.c.l.b16 %v93
    %v142 = vunpack.c.l.b16 %v94
    %v143 = vunpack.c.l.b16 %v95
    %v144 = vunpack.c.l.b16 %v96
    %v145 = vunpack.c.l.b16 %v97
    %v146 = vunpack.c.l.b16 %v98
    %v147 = vunpack.c.l.b16 %v99
    %v148 = vunpack.c.l.b16 %v100
    %v149 = vpack.c.b16 %v134, %v133
    %v150 = vpack.c.b16 %v136, %v135
    %v151 = vpack.c.b16 %v138, %v137
    %v152 = vpack.c.b16 %v140, %v139
    %v153 = vpack.c.b16 %v142, %v141
    %v154 = vpack.c.b16 %v144, %v143
    %v155 = vpack.c.b16 %v146, %v145
    %v156 = vpack.c.b16 %v148, %v147
    %v181 = vunpack.c.l.b16 %v101
    %v182 = vunpack.c.l.b16 %v102
    %v183 = vunpack.c.l.b16 %v103
    %v184 = vunpack.c.l.b16 %v104
    %v185 = vunpack.c.l.b16 %v105
    %v186 = vunpack.c.l.b16 %v106
    %v187 = vunpack.c.l.b16 %v107
    %v188 = vunpack.c.l.b16 %v108
    %v189 = vunpack.c.l.b16 %v109
    %v190 = vunpack.c.l.b16 %v110
    %v191 = vunpack.c.l.b16 %v111
    %v192 = vunpack.c.l.b16 %v112
    %v193 = vunpack.c.l.b16 %v113
    %v194 = vunpack.c.l.b16 %v114
    %v195 = vunpack.c.l.b16 %v115
    %v196 = vunpack.c.l.b16 %v116
    %v197 = vpack.c.b16 %v182, %v181
    %v198 = vpack.c.b16 %v184, %v183
    %v199 = vpack.c.b16 %v186, %v185
    %v200 = vpack.c.b16 %v188, %v187
    %v201 = vpack.c.b16 %v190, %v189
    %v202 = vpack.c.b16 %v192, %v191
    %v203 = vpack.c.b16 %v194, %v193
    %v204 = vpack.c.b16 %v196, %v195
    %213 = vmatpush.bf16.msra.mxu0 %v204
    %214 = vmatpush.bf16.msra.mxu0 %v203
    %215 = vmatpush.bf16.msra.mxu0 %v202
    %216 = vmatpush.bf16.msra.mxu0 %v201
    %217 = vmatpush.bf16.msra.mxu0 %v200
    %218 = vmatpush.bf16.msra.mxu0 %v199
    %219 = vmatpush.bf16.msra.mxu0 %v198
    %220 = vmatpush.bf16.msra.mxu0 %v197
    %221 = vmatmul.bf16.gmra.mxu0 %v149
    %v222 = vpop.f32.mrf.mxu0
    %v223 = vadd.f32 0.0, %v222
    %v224 = vpop.f32.mrf.mxu0
    %v225 = vadd.f32 0.0, %v224
    %226 = vmatmul.bf16.gmra.mxu0 %v150
    %v227 = vpop.f32.mrf.mxu0
    %v228 = vadd.f32 0.0, %v227
    %v229 = vpop.f32.mrf.mxu0
    %v230 = vadd.f32 0.0, %v229
    %231 = vmatmul.bf16.gmra.mxu0 %v151
    %v232 = vpop.f32.mrf.mxu0
    %v233 = vadd.f32 0.0, %v232
    %v234 = vpop.f32.mrf.mxu0
    %v235 = vadd.f32 0.0, %v234
    %236 = vmatmul.bf16.gmra.mxu0 %v152
    %v237 = vpop.f32.mrf.mxu0
    %v238 = vadd.f32 0.0, %v237
    %v239 = vpop.f32.mrf.mxu0
    %v240 = vadd.f32 0.0, %v239
    %241 = vmatmul.bf16.gmra.mxu0 %v153
    %v242 = vpop.f32.mrf.mxu0
    %v243 = vadd.f32 0.0, %v242
    %v244 = vpop.f32.mrf.mxu0
    %v245 = vadd.f32 0.0, %v244
    %246 = vmatmul.bf16.gmra.mxu0 %v154
    %v247 = vpop.f32.mrf.mxu0
    %v248 = vadd.f32 0.0, %v247
    %v249 = vpop.f32.mrf.mxu0
    %v250 = vadd.f32 0.0, %v249
    %251 = vmatmul.bf16.gmra.mxu0 %v155
    %v252 = vpop.f32.mrf.mxu0
    %v253 = vadd.f32 0.0, %v252
    %v254 = vpop.f32.mrf.mxu0
    %v255 = vadd.f32 0.0, %v254
    %256 = vmatmul.bf16.gmra.mxu0 %v156
    %v257 = vpop.f32.mrf.mxu0
    %v258 = vadd.f32 0.0, %v257
    %v259 = vpop.f32.mrf.mxu0
    %v260 = vadd.f32 0.0, %v259
    %261 = vdwg.mxu0
    %v262 = vpack.c.bf16 %v225, %v223
    %v263 = vpack.c.bf16 %v230, %v228
    %v264 = vpack.c.bf16 %v235, %v233
    %v265 = vpack.c.bf16 %v240, %v238
    %v266 = vpack.c.bf16 %v245, %v243
    %v267 = vpack.c.bf16 %v250, %v248
    %v268 = vpack.c.bf16 %v255, %v253
    %v269 = vpack.c.bf16 %v260, %v258
    %v270 = vld [vmem:[#allocation2] sm:$0xff]
    %v271 = vld [vmem:[#allocation2 + $0x8] sm:$0xff]
    %v272 = vld [vmem:[#allocation2 + $0x10] sm:$0xff]
    %v273 = vld [vmem:[#allocation2 + $0x18] sm:$0xff]
    %v274 = vld [vmem:[#allocation2 + $0x20] sm:$0xff]
    %v275 = vld [vmem:[#allocation2 + $0x28] sm:$0xff]
    %v276 = vld [vmem:[#allocation2 + $0x30] sm:$0xff]
    %v277 = vld [vmem:[#allocation2 + $0x38] sm:$0xff]
    %v278 = vld [vmem:[#allocation2 + $0x40] sm:$0xff]
    %v279 = vld [vmem:[#allocation2 + $0x48] sm:$0xff]
    %v280 = vld [vmem:[#allocation2 + $0x50] sm:$0xff]
    %v281 = vld [vmem:[#allocation2 + $0x58] sm:$0xff]
    %v282 = vld [vmem:[#allocation2 + $0x60] sm:$0xff]
    %v283 = vld [vmem:[#allocation2 + $0x68] sm:$0xff]
    %v284 = vld [vmem:[#allocation2 + $0x70] sm:$0xff]
    %v285 = vld [vmem:[#allocation2 + $0x78] sm:$0xff]
    %v286 = vld [vmem:[#allocation3] sm:$0xf]
    %v287 = vld [vmem:[#allocation3 + $0x4] sm:$0xf]
    %v288 = vld [vmem:[#allocation3 + $0x8] sm:$0xf]
    %v289 = vld [vmem:[#allocation3 + $0xc] sm:$0xf]
    %v290 = vld [vmem:[#allocation3 + $0x10] sm:$0xf]
    %v291 = vld [vmem:[#allocation3 + $0x14] sm:$0xf]
    %v292 = vld [vmem:[#allocation3 + $0x18] sm:$0xf]
    %v293 = vld [vmem:[#allocation3 + $0x1c] sm:$0xf]
    %v294 = vld [vmem:[#allocation3 + $0x20] sm:$0xf]
    %v295 = vld [vmem:[#allocation3 + $0x24] sm:$0xf]
    %v296 = vld [vmem:[#allocation3 + $0x28] sm:$0xf]
    %v297 = vld [vmem:[#allocation3 + $0x2c] sm:$0xf]
    %v298 = vld [vmem:[#allocation3 + $0x30] sm:$0xf]
    %v299 = vld [vmem:[#allocation3 + $0x34] sm:$0xf]
    %v300 = vld [vmem:[#allocation3 + $0x38] sm:$0xf]
    %v301 = vld [vmem:[#allocation3 + $0x3c] sm:$0xf]
    %v318 = vunpack.c.l.b16 %v286
    %v319 = vunpack.c.l.b16 %v287
    %v320 = vunpack.c.l.b16 %v288
    %v321 = vunpack.c.l.b16 %v289
    %v322 = vunpack.c.l.b16 %v290
    %v323 = vunpack.c.l.b16 %v291
    %v324 = vunpack.c.l.b16 %v292
    %v325 = vunpack.c.l.b16 %v293
    %v326 = vunpack.c.l.b16 %v294
    %v327 = vunpack.c.l.b16 %v295
    %v328 = vunpack.c.l.b16 %v296
    %v329 = vunpack.c.l.b16 %v297
    %v330 = vunpack.c.l.b16 %v298
    %v331 = vunpack.c.l.b16 %v299
    %v332 = vunpack.c.l.b16 %v300
    %v333 = vunpack.c.l.b16 %v301
    %v334 = vpack.c.b16 %v319, %v318
    %v335 = vpack.c.b16 %v321, %v320
    %v336 = vpack.c.b16 %v323, %v322
    %v337 = vpack.c.b16 %v325, %v324
    %v338 = vpack.c.b16 %v327, %v326
    %v339 = vpack.c.b16 %v329, %v328
    %v340 = vpack.c.b16 %v331, %v330
    %v341 = vpack.c.b16 %v333, %v332
    %350 = vmatpush.bf16.msra.mxu0 %v269
    %351 = vmatpush.bf16.msra.mxu0 %v268
    %352 = vmatpush.bf16.msra.mxu0 %v267
    %353 = vmatpush.bf16.msra.mxu0 %v266
    %354 = vmatpush.bf16.msra.mxu0 %v265
    %355 = vmatpush.bf16.msra.mxu0 %v264
    %356 = vmatpush.bf16.msra.mxu0 %v263
    %357 = vmatpush.bf16.msra.mxu0 %v262
    %358 = vmatmul.bf16.gmra.mxu0 %v334
    %v359 = vpop.f32.mrf.mxu0
    %v360 = vadd.f32 0.0, %v359
    %v361 = vpop.f32.mrf.mxu0
    %v362 = vadd.f32 0.0, %v361
    %363 = vmatmul.bf16.gmra.mxu0 %v335
    %v364 = vpop.f32.mrf.mxu0
    %v365 = vadd.f32 0.0, %v364
    %v366 = vpop.f32.mrf.mxu0
    %v367 = vadd.f32 0.0, %v366
    %368 = vmatmul.bf16.gmra.mxu0 %v336
    %v369 = vpop.f32.mrf.mxu0
    %v370 = vadd.f32 0.0, %v369
    %v371 = vpop.f32.mrf.mxu0
    %v372 = vadd.f32 0.0, %v371
    %373 = vmatmul.bf16.gmra.mxu0 %v337
    %v374 = vpop.f32.mrf.mxu0
    %v375 = vadd.f32 0.0, %v374
    %v376 = vpop.f32.mrf.mxu0
    %v377 = vadd.f32 0.0, %v376
    %378 = vmatmul.bf16.gmra.mxu0 %v338
    %v379 = vpop.f32.mrf.mxu0
    %v380 = vadd.f32 0.0, %v379
    %v381 = vpop.f32.mrf.mxu0
    %v382 = vadd.f32 0.0, %v381
    %383 = vmatmul.bf16.gmra.mxu0 %v339
    %v384 = vpop.f32.mrf.mxu0
    %v385 = vadd.f32 0.0, %v384
    %v386 = vpop.f32.mrf.mxu0
    %v387 = vadd.f32 0.0, %v386
    %388 = vmatmul.bf16.gmra.mxu0 %v340
    %v389 = vpop.f32.mrf.mxu0
    %v390 = vadd.f32 0.0, %v389
    %v391 = vpop.f32.mrf.mxu0
    %v392 = vadd.f32 0.0, %v391
    %393 = vmatmul.bf16.gmra.mxu0 %v341
    %v394 = vpop.f32.mrf.mxu0
    %v395 = vadd.f32 0.0, %v394
    %v396 = vpop.f32.mrf.mxu0
    %v397 = vadd.f32 0.0, %v396
    %398 = vdwg.mxu0
    %v399 = vadd.f32 %v270, %v360
    %v400 = vadd.f32 %v271, %v362
    %v401 = vadd.f32 %v272, %v365
    %v402 = vadd.f32 %v273, %v367
    %v403 = vadd.f32 %v274, %v370
    %v404 = vadd.f32 %v275, %v372
    %v405 = vadd.f32 %v276, %v375
    %v406 = vadd.f32 %v277, %v377
    %v407 = vadd.f32 %v278, %v380
    %v408 = vadd.f32 %v279, %v382
    %v409 = vadd.f32 %v280, %v385
    %v410 = vadd.f32 %v281, %v387
    %v411 = vadd.f32 %v282, %v390
    %v412 = vadd.f32 %v283, %v392
    %v413 = vadd.f32 %v284, %v395
    %v414 = vadd.f32 %v285, %v397
    %415 = vst [vmem:[#allocation2] sm:$0xff] %v399
    %416 = vst [vmem:[#allocation2 + $0x8] sm:$0xff] %v400
    %417 = vst [vmem:[#allocation2 + $0x10] sm:$0xff] %v401
    %418 = vst [vmem:[#allocation2 + $0x18] sm:$0xff] %v402
    %419 = vst [vmem:[#allocation2 + $0x20] sm:$0xff] %v403
    %420 = vst [vmem:[#allocation2 + $0x28] sm:$0xff] %v404
    %421 = vst [vmem:[#allocation2 + $0x30] sm:$0xff] %v405
    %422 = vst [vmem:[#allocation2 + $0x38] sm:$0xff] %v406
    %423 = vst [vmem:[#allocation2 + $0x40] sm:$0xff] %v407
    %424 = vst [vmem:[#allocation2 + $0x48] sm:$0xff] %v408
    %425 = vst [vmem:[#allocation2 + $0x50] sm:$0xff] %v409
    %426 = vst [vmem:[#allocation2 + $0x58] sm:$0xff] %v410
    %427 = vst [vmem:[#allocation2 + $0x60] sm:$0xff] %v411
    %428 = vst [vmem:[#allocation2 + $0x68] sm:$0xff] %v412
    %429 = vst [vmem:[#allocation2 + $0x70] sm:$0xff] %v413
    %430 = vst [vmem:[#allocation2 + $0x78] sm:$0xff] %v414
    // Predicated region
    $region34: #{tpu_custom_call.1} parent=1 // pred_check
      %p431 = pneg %p65
    $region35: #{tpu_custom_call.1} parent=1 // pred_check_branch
      %433 = sbr.rel (%p431) target = $region37
    $region36: #{tpu_custom_call.1} parent=1 // pred_region
      %v434 = vld [vmem:[#allocation2] sm:$0xff]
      %v435 = vld [vmem:[#allocation2 + $0x8] sm:$0xff]
      %v436 = vld [vmem:[#allocation2 + $0x10] sm:$0xff]
      %v437 = vld [vmem:[#allocation2 + $0x18] sm:$0xff]
      %v438 = vld [vmem:[#allocation2 + $0x20] sm:$0xff]
      %v439 = vld [vmem:[#allocation2 + $0x28] sm:$0xff]
      %v440 = vld [vmem:[#allocation2 + $0x30] sm:$0xff]
      %v441 = vld [vmem:[#allocation2 + $0x38] sm:$0xff]
      %v442 = vld [vmem:[#allocation2 + $0x40] sm:$0xff]
      %v443 = vld [vmem:[#allocation2 + $0x48] sm:$0xff]
      %v444 = vld [vmem:[#allocation2 + $0x50] sm:$0xff]
      %v445 = vld [vmem:[#allocation2 + $0x58] sm:$0xff]
      %v446 = vld [vmem:[#allocation2 + $0x60] sm:$0xff]
      %v447 = vld [vmem:[#allocation2 + $0x68] sm:$0xff]
      %v448 = vld [vmem:[#allocation2 + $0x70] sm:$0xff]
      %v449 = vld [vmem:[#allocation2 + $0x78] sm:$0xff]
      %v450 = vld [vmem:[%s3] sm:$0x1]
      %v452 = vperm.slane %v450, 0
      %v454 = vadd.f32 %v434, %v452
      %v455 = vadd.f32 %v435, %v452
      %v456 = vadd.f32 %v436, %v452
      %v457 = vadd.f32 %v437, %v452
      %v458 = vadd.f32 %v438, %v452
      %v459 = vadd.f32 %v439, %v452
      %v460 = vadd.f32 %v440, %v452
      %v461 = vadd.f32 %v441, %v452
      %v462 = vadd.f32 %v442, %v452
      %v463 = vadd.f32 %v443, %v452
      %v464 = vadd.f32 %v444, %v452
      %v465 = vadd.f32 %v445, %v452
      %v466 = vadd.f32 %v446, %v452
      %v467 = vadd.f32 %v447, %v452
      %v468 = vadd.f32 %v448, %v452
      %v469 = vadd.f32 %v449, %v452
      %v470 = vmax.f32 %v454, 0.0
      %v471 = vmax.f32 %v455, 0.0
      %v472 = vmax.f32 %v456, 0.0
      %v473 = vmax.f32 %v457, 0.0
      %v474 = vmax.f32 %v458, 0.0
      %v475 = vmax.f32 %v459, 0.0
      %v476 = vmax.f32 %v460, 0.0
      %v477 = vmax.f32 %v461, 0.0
      %v478 = vmax.f32 %v462, 0.0
      %v479 = vmax.f32 %v463, 0.0
      %v480 = vmax.f32 %v464, 0.0
      %v481 = vmax.f32 %v465, 0.0
      %v482 = vmax.f32 %v466, 0.0
      %v483 = vmax.f32 %v467, 0.0
      %v484 = vmax.f32 %v468, 0.0
      %v485 = vmax.f32 %v469, 0.0
      %v486 = vpack.c.bf16 %v470, %v470
      %v487 = vpack.c.bf16 %v471, %v471
      %v488 = vpack.c.bf16 %v472, %v472
      %v489 = vpack.c.bf16 %v473, %v473
      %v490 = vpack.c.bf16 %v474, %v474
      %v491 = vpack.c.bf16 %v475, %v475
      %v492 = vpack.c.bf16 %v476, %v476
      %v493 = vpack.c.bf16 %v477, %v477
      %v494 = vpack.c.bf16 %v478, %v478
      %v495 = vpack.c.bf16 %v479, %v479
      %v496 = vpack.c.bf16 %v480, %v480
      %v497 = vpack.c.bf16 %v481, %v481
      %v498 = vpack.c.bf16 %v482, %v482
      %v499 = vpack.c.bf16 %v483, %v483
      %v500 = vpack.c.bf16 %v484, %v484
      %v501 = vpack.c.bf16 %v485, %v485
      %502 = vst [vmem:[#allocation9] sm:$0xf] %v486
      %503 = vst [vmem:[#allocation9 + $0x4] sm:$0xf] %v487
      %504 = vst [vmem:[#allocation9 + $0x8] sm:$0xf] %v488
      %505 = vst [vmem:[#allocation9 + $0xc] sm:$0xf] %v489
      %506 = vst [vmem:[#allocation9 + $0x10] sm:$0xf] %v490
      %507 = vst [vmem:[#allocation9 + $0x14] sm:$0xf] %v491
      %508 = vst [vmem:[#allocation9 + $0x18] sm:$0xf] %v492
      %509 = vst [vmem:[#allocation9 + $0x1c] sm:$0xf] %v493
      %510 = vst [vmem:[#allocation9 + $0x20] sm:$0xf] %v494
      %511 = vst [vmem:[#allocation9 + $0x24] sm:$0xf] %v495
      %512 = vst [vmem:[#allocation9 + $0x28] sm:$0xf] %v496
      %513 = vst [vmem:[#allocation9 + $0x2c] sm:$0xf] %v497
      %514 = vst [vmem:[#allocation9 + $0x30] sm:$0xf] %v498
      %515 = vst [vmem:[#allocation9 + $0x34] sm:$0xf] %v499
      %516 = vst [vmem:[#allocation9 + $0x38] sm:$0xf] %v500
      %517 = vst [vmem:[#allocation9 + $0x3c] sm:$0xf] %v501
    $region37: #{tpu_custom_call.1} parent=1 // pred_fallthru
      _
    // Predicated region
    $region38: #{tpu_custom_call.1} parent=1 // pred_check
      _
    $region39: #{tpu_custom_call.1} parent=1 // pred_check_branch
      %519 = sbr.rel (0) target = $region41
    $region40: #{tpu_custom_call.1} parent=1 // pred_region
      %521 = vsyncadd [#allocation5], 0
      %s522 = sshll.u32 [#allocation9], 4
      %s523 = int_to_ptr.vmem [resolvable:$true] %s522
      %s524 = sshll.u32 %s4, 4
      %s525 = int_to_ptr.hbm [resolvable:$true] %s524
      %530 = dma.vmem_to_hbm [thread:$0]  %s523, 1024, %s525, [#allocation5], 64, 64, 4
    $region41: #{tpu_custom_call.1} parent=1 // pred_fallthru
      _
    // Predicated region
    $region42: #{tpu_custom_call.1} parent=1 // pred_check
      _
    $region43: #{tpu_custom_call.1} parent=1 // pred_check_branch
      %532 = sbr.rel (0) target = $region45
    $region44: #{tpu_custom_call.1} parent=1 // pred_region
      %534 = dma.done [#allocation5], 1024
    $region45: #{tpu_custom_call.1} parent=1 // pred_fallthru
      _
    %535 = vsyncpa [#allocation4], 1
    %536 = vsyncpa [#allocation7], 1
    %537 = vsyncpa [#allocation5], 1

</llo_original>
